<compile_context>
chip_gen: v6e
topology: v6e:2x2x1
jax: 0.10.0
libtpu: 0.0.40
codegen_flags: <defaults>
</compile_context>

<pallas_src>
import functools

import jax
import jax.numpy as jnp
from jax import lax
from jax.experimental import pallas as pl
from jax.experimental.pallas import tpu as pltpu

LANE = 128            # TPU lane width: last dim of every block
MAX_ROW_TILE = 8192   # rows per grid step -> 4 MiB f32 per input per step
NUM_CORES = 2         # leading "parallel" grid axis: uses both TCs on v7x,
                      # runs sequentially (harmless) on single-TC v5e/v6e.


def _round_up(x: int, m: int) -> int:
    return (x + m - 1) // m * m


def _cdiv(a: int, b: int) -> int:
    return (a + b - 1) // b


def _dice_bce_partial_kernel(p_ref, t_ref, o_ref,
                             pt_acc, st_acc, bce_acc,
                             *, row_tile: int, rem_rows: int,
                             blocks_total: int, blocks_per_core: int,
                             binary_targets: bool):
    c = pl.program_id(0)          # parallel axis (TensorCore split)
    i = pl.program_id(1)          # reduction axis over row blocks
    flat_blk = c * blocks_per_core + i

    @pl.when(i == 0)
    def _init():
        pt_acc[...] = jnp.zeros_like(pt_acc)
        st_acc[...] = jnp.zeros_like(st_acc)
        bce_acc[...] = jnp.zeros_like(bce_acc)

    def vsum(x):
        # (row_tile,128) -> (row_tile//8, 8, 128), reduce leading axis:
        # unmasked VPU adds into a vreg-shaped (8,128) partial; the
        # cross-sublane/cross-lane reduce is deferred to the wrapper.
        return jnp.sum(x.reshape(row_tile // 8, 8, LANE), axis=0)

    def accumulate(mask):
        p = p_ref[...].astype(jnp.float32)
        t = t_ref[...].astype(jnp.float32)
        if mask is not None:
            # The OOB rows of a ragged Pallas block are NOT guaranteed to be
            # zero, so the mask must fully cover them.
            p = jnp.where(mask, p, 0.0)
            t = jnp.where(mask, t, 0.0)
        # Dice sums.
        pt_acc[...] += vsum(p * t)
        st_acc[...] += vsum(p + t)
        # BCE: accumulate s = t*log(p) + (1-t)*log(1-p); negation and 1/n are
        # applied once in the wrapper.  Logs are clamped at -100 exactly like
        # torch.nn.BCELoss; the clamp also makes a (p=0, t=0) padded/masked
        # element contribute exactly 0 (guard: removing the clamp would give
        # 0 * (-inf) = NaN on padded elements).
        if binary_targets:
            q = jnp.where(t > 0.5, p, 1.0 - p)
            s = jnp.maximum(jnp.log(q), -100.0)
        else:
            log_p = jnp.maximum(jnp.log(p), -100.0)
            log_1mp = jnp.maximum(jnp.log(1.0 - p), -100.0)
            s = t * (log_p - log_1mp) + log_1mp
        bce_acc[...] += vsum(s)

    full_blocks = blocks_total - (1 if rem_rows else 0)   # static

    if full_blocks > 0:
        @pl.when(flat_blk < full_blocks)
        def _full():
            accumulate(mask=None)

    if rem_rows:
        @pl.when(flat_blk == blocks_total - 1)
        def _ragged():
            row_id = lax.broadcasted_iota(jnp.int32, (row_tile, 1), 0)
            accumulate(mask=row_id < rem_rows)

    # Blocks with flat_blk >= blocks_total (grid over-coverage when the block
    # count does not divide evenly across cores) fall through and contribute 0.

    @pl.when(i == blocks_per_core - 1)
    def _finalize():
        o_ref[0] = pt_acc[...]
        o_ref[1] = st_acc[...]
        o_ref[2] = bce_acc[...]


def dice_bce_loss(pred, target, smooth: float = 1.0, *,
                  binary_targets: bool = False):
    """Fused dice + BCE loss; matches the PyTorch `Loss` module forward.

    Set binary_targets=True only when targets are exactly {0, 1}; it enables a
    single-log fast path that is identical to the general formula in that case.
    """
    assert pred.shape == target.shape, "pred/target shape mismatch"
    n = int(pred.size)
    assert n > 0

    def _to_float(x):
        return x if jnp.issubdtype(x.dtype, jnp.floating) else x.astype(jnp.float32)

    # Keep native (possibly bf16) dtype: the kernel upcasts to f32 internally,
    # so no extra HBM pass is spent on a wrapper-side cast.
    p_flat = jnp.ravel(_to_float(pred))
    t_flat = jnp.ravel(_to_float(target))

    # Lane-pad only when needed (at most 127 elements).  A (p=0, t=0) pad
    # element contributes exactly 0 to every sum thanks to the -100 log clamp.
    n_pad = _round_up(n, LANE)
    if n_pad != n:
        p_flat = jnp.pad(p_flat, (0, n_pad - n))
        t_flat = jnp.pad(t_flat, (0, n_pad - n))

    rows = n_pad // LANE
    p2 = p_flat.reshape(rows, LANE)
    t2 = t_flat.reshape(rows, LANE)

    row_tile = min(MAX_ROW_TILE, _round_up(_cdiv(rows, NUM_CORES), 8))
    blocks_total = _cdiv(rows, row_tile)
    blocks_per_core = _cdiv(blocks_total, NUM_CORES)
    rem_rows = rows % row_tile            # rows in the (single) ragged block

    kernel = functools.partial(
        _dice_bce_partial_kernel,
        row_tile=row_tile, rem_rows=rem_rows, blocks_total=blocks_total,
        blocks_per_core=blocks_per_core, binary_targets=binary_targets)

    def in_map(c, i):
        # Clamp so grid over-coverage blocks re-read the last valid block;
        # their contribution is skipped inside the kernel.
        return (jnp.minimum(c * blocks_per_core + i, blocks_total - 1), 0)

    parts = pl.pallas_call(
        kernel,
        out_shape=jax.ShapeDtypeStruct((NUM_CORES * 3, 8, LANE), jnp.float32),
        grid=(NUM_CORES, blocks_per_core),
        in_specs=[
            pl.BlockSpec((row_tile, LANE), in_map),
            pl.BlockSpec((row_tile, LANE), in_map),
        ],
        out_specs=pl.BlockSpec((3, 8, LANE), lambda c, i: (c, 0, 0)),
        scratch_shapes=[
            pltpu.VMEM((8, LANE), jnp.float32),   # sum(p*t)   per vreg slot
            pltpu.VMEM((8, LANE), jnp.float32),   # sum(p+t)   per vreg slot
            pltpu.VMEM((8, LANE), jnp.float32),   # sum(bce-s) per vreg slot
        ],
        compiler_params=pltpu.CompilerParams(
            # Leading axis is split across TensorCores on v7x; the row-block
            # axis carries the resident accumulators so it must be arbitrary.
            dimension_semantics=("parallel", "arbitrary"),
            # 2 inputs x 2 buffers x 4 MiB = 16 MiB double-buffered working
            # set; 32 MiB gives headroom and fits v5e's scoped VMEM override
            # and v7x's smaller physical VMEM alike.
            vmem_limit_bytes=32 * 1024 * 1024,
        ),
    )(p2, t2)

    # Combine the raw per-core partial sums.  Dice must be computed from the
    # globally combined sums (never per-core and then averaged).
    parts = parts.reshape(NUM_CORES, 3, 8, LANE)
    s_pt = jnp.sum(parts[:, 0])
    s_st = jnp.sum(parts[:, 1])
    s_bce = jnp.sum(parts[:, 2])

    dice_loss = 1.0 - (2.0 * s_pt + smooth) / (s_st + smooth)
    bce_loss = -s_bce / n
    return dice_loss + bce_loss


def _reference(inputs, targets, smooth=1.0):
    """Pure-JAX reference of the PyTorch module forward."""
    inter = 2.0 * jnp.sum(inputs * targets) + smooth
    union = jnp.sum(inputs) + jnp.sum(targets) + smooth
    dice = 1.0 - inter / union
    log_p = jnp.maximum(jnp.log(inputs), -100.0)
    log_1mp = jnp.maximum(jnp.log(1.0 - inputs), -100.0)
    bce = jnp.mean(-(targets * log_p + (1.0 - targets) * log_1mp))
    return dice + bce


if __name__ == "__main__":
    key = jax.random.PRNGKey(0)
    k1, k2, k3, k4 = jax.random.split(key, 4)

    # Segmentation-style inputs: probabilities in (0,1) and binary targets.
    B, C, H, W = 2, 4, 16, 16
    inputs = jax.nn.sigmoid(jax.random.normal(k1, (B, C, H, W), jnp.float32))
    targets = (jax.random.uniform(k2, (B, C, H, W)) > 0.5).astype(jnp.float32)

    loss = jax.block_until_ready(dice_bce_loss(inputs, targets))
    loss_fast = jax.block_until_ready(
        dice_bce_loss(inputs, targets, binary_targets=True))
    ref = _reference(inputs, targets)
    assert jnp.allclose(loss, ref, atol=1e-4, rtol=1e-4), (float(loss), float(ref))
    assert jnp.allclose(loss_fast, ref, atol=1e-4, rtol=1e-4), (float(loss_fast), float(ref))

    # Ragged / lane-padded shape exercises the in-kernel tail mask path.
    shp = (3, 5, 7, 11)   # 1155 elements -> lane pad + ragged last row block
    inputs2 = jax.nn.sigmoid(jax.random.normal(k3, shp, jnp.float32))
    targets2 = (jax.random.uniform(k4, shp) > 0.5).astype(jnp.float32)
    loss2 = jax.block_until_ready(dice_bce_loss(inputs2, targets2))
    ref2 = _reference(inputs2, targets2)
    assert jnp.allclose(loss2, ref2, atol=1e-4, rtol=1e-4), (float(loss2), float(ref2))

    print("KERNEL_OK")
</pallas_src>

<mosaic_0001>
module attributes {stable_mosaic.version = 11 : i64} {
  func.func @_dice_bce_partial_kernel(%arg0: i32, %arg1: i32, %arg2: memref<8x128xf32, #tpu.memory_space<vmem>>, %arg3: memref<8x128xf32, #tpu.memory_space<vmem>>, %arg4: memref<3x8x128xf32, #tpu.memory_space<vmem>>, %arg5: memref<8x128xf32, #tpu.memory_space<vmem>>, %arg6: memref<8x128xf32, #tpu.memory_space<vmem>>, %arg7: memref<8x128xf32, #tpu.memory_space<vmem>>) attributes {dimension_semantics = [#tpu.dimension_semantics<parallel>, #tpu.dimension_semantics<arbitrary>], iteration_bounds = array<i64: 2, 1>, scalar_prefetch = 0 : i64, scratch_operands = 3 : i64, tpu.core_type = #tpu.core_type<tc>, window_params = [{transform_indices = @transform_0, window_bounds = array<i64: 8, 128>}, {transform_indices = @transform_1, window_bounds = array<i64: 8, 128>}, {transform_indices = @transform_2, window_bounds = array<i64: 3, 8, 128>}]} {
    %c1_i32 = arith.constant 1 : i32
    %0 = arith.muli %arg0, %c1_i32 : i32
    %1 = arith.addi %0, %arg1 : i32
    %c0_i32 = arith.constant 0 : i32
    %2 = arith.cmpi eq, %arg1, %c0_i32 : i32
    %3 = arith.extui %2 : i1 to i32
    %c0_i32_0 = arith.constant 0 : i32
    %4 = arith.cmpi ne, %3, %c0_i32_0 : i32
    scf.if %4 {
      %cst = arith.constant 0.000000e+00 : f32
      %11 = vector.broadcast %cst : f32 to vector<8x128xf32>
      %c0 = arith.constant 0 : index
      %c0_4 = arith.constant 0 : index
      %12 = vector.load %arg5[%c0, %c0_4] : memref<8x128xf32, #tpu.memory_space<vmem>>, vector<8x128xf32>
      tpu.vector_store %arg5[%c0, %c0_4], %11 {strides = array<i32>} : memref<8x128xf32, #tpu.memory_space<vmem>>, vector<8x128xf32>,
      %cst_5 = arith.constant 0.000000e+00 : f32
      %13 = vector.broadcast %cst_5 : f32 to vector<8x128xf32>
      %c0_6 = arith.constant 0 : index
      %c0_7 = arith.constant 0 : index
      %14 = vector.load %arg6[%c0_6, %c0_7] : memref<8x128xf32, #tpu.memory_space<vmem>>, vector<8x128xf32>
      tpu.vector_store %arg6[%c0_6, %c0_7], %13 {strides = array<i32>} : memref<8x128xf32, #tpu.memory_space<vmem>>, vector<8x128xf32>,
      %cst_8 = arith.constant 0.000000e+00 : f32
      %15 = vector.broadcast %cst_8 : f32 to vector<8x128xf32>
      %c0_9 = arith.constant 0 : index
      %c0_10 = arith.constant 0 : index
      %16 = vector.load %arg7[%c0_9, %c0_10] : memref<8x128xf32, #tpu.memory_space<vmem>>, vector<8x128xf32>
      tpu.vector_store %arg7[%c0_9, %c0_10], %15 {strides = array<i32>} : memref<8x128xf32, #tpu.memory_space<vmem>>, vector<8x128xf32>,
    } else {
    }
    %c2_i32 = arith.constant 2 : i32
    %5 = arith.cmpi slt, %1, %c2_i32 : i32
    %6 = arith.extui %5 : i1 to i32
    %c0_i32_1 = arith.constant 0 : i32
    %7 = arith.cmpi ne, %6, %c0_i32_1 : i32
    scf.if %7 {
      %c0 = arith.constant 0 : index
      %c0_4 = arith.constant 0 : index
      %11 = vector.load %arg2[%c0, %c0_4] : memref<8x128xf32, #tpu.memory_space<vmem>>, vector<8x128xf32>
      %c0_5 = arith.constant 0 : index
      %c0_6 = arith.constant 0 : index
      %12 = vector.load %arg3[%c0_5, %c0_6] : memref<8x128xf32, #tpu.memory_space<vmem>>, vector<8x128xf32>
      %c0_7 = arith.constant 0 : index
      %c0_8 = arith.constant 0 : index
      %13 = vector.load %arg5[%c0_7, %c0_8] : memref<8x128xf32, #tpu.memory_space<vmem>>, vector<8x128xf32>
      %14 = arith.mulf %11, %12 : vector<8x128xf32>
      %15 = vector.shape_cast %14 : vector<8x128xf32> to vector<1x8x128xf32>
      %cst = arith.constant dense<0.000000e+00> : vector<8x128xf32>
      %16 = vector.multi_reduction <add>, %15, %cst [0] : vector<1x8x128xf32> to vector<8x128xf32>
      %17 = arith.addf %13, %16 : vector<8x128xf32>
      %c0_9 = arith.constant 0 : index
      %c0_10 = arith.constant 0 : index
      %18 = vector.load %arg5[%c0_9, %c0_10] : memref<8x128xf32, #tpu.memory_space<vmem>>, vector<8x128xf32>
      tpu.vector_store %arg5[%c0_9, %c0_10], %17 {strides = array<i32>} : memref<8x128xf32, #tpu.memory_space<vmem>>, vector<8x128xf32>,
      %c0_11 = arith.constant 0 : index
      %c0_12 = arith.constant 0 : index
      %19 = vector.load %arg6[%c0_11, %c0_12] : memref<8x128xf32, #tpu.memory_space<vmem>>, vector<8x128xf32>
      %20 = arith.addf %11, %12 : vector<8x128xf32>
      %21 = vector.shape_cast %20 : vector<8x128xf32> to vector<1x8x128xf32>
      %cst_13 = arith.constant dense<0.000000e+00> : vector<8x128xf32>
      %22 = vector.multi_reduction <add>, %21, %cst_13 [0] : vector<1x8x128xf32> to vector<8x128xf32>
      %23 = arith.addf %19, %22 : vector<8x128xf32>
      %c0_14 = arith.constant 0 : index
      %c0_15 = arith.constant 0 : index
      %24 = vector.load %arg6[%c0_14, %c0_15] : memref<8x128xf32, #tpu.memory_space<vmem>>, vector<8x128xf32>
      tpu.vector_store %arg6[%c0_14, %c0_15], %23 {strides = array<i32>} : memref<8x128xf32, #tpu.memory_space<vmem>>, vector<8x128xf32>,
      %25 = math.log %11 : vector<8x128xf32>
      %cst_16 = arith.constant -1.000000e+02 : f32
      %26 = vector.broadcast %cst_16 : f32 to vector<8x128xf32>
      %27 = arith.maximumf %25, %26 : vector<8x128xf32>
      %cst_17 = arith.constant 1.000000e+00 : f32
      %28 = vector.broadcast %cst_17 : f32 to vector<8x128xf32>
      %29 = arith.subf %28, %11 : vector<8x128xf32>
      %30 = math.log %29 : vector<8x128xf32>
      %cst_18 = arith.constant -1.000000e+02 : f32
      %31 = vector.broadcast %cst_18 : f32 to vector<8x128xf32>
      %32 = arith.maximumf %30, %31 : vector<8x128xf32>
      %33 = arith.subf %27, %32 : vector<8x128xf32>
      %34 = arith.mulf %12, %33 : vector<8x128xf32>
      %35 = arith.addf %34, %32 : vector<8x128xf32>
      %c0_19 = arith.constant 0 : index
      %c0_20 = arith.constant 0 : index
      %36 = vector.load %arg7[%c0_19, %c0_20] : memref<8x128xf32, #tpu.memory_space<vmem>>, vector<8x128xf32>
      %37 = vector.shape_cast %35 : vector<8x128xf32> to vector<1x8x128xf32>
      %cst_21 = arith.constant dense<0.000000e+00> : vector<8x128xf32>
      %38 = vector.multi_reduction <add>, %37, %cst_21 [0] : vector<1x8x128xf32> to vector<8x128xf32>
      %39 = arith.addf %36, %38 : vector<8x128xf32>
      %c0_22 = arith.constant 0 : index
      %c0_23 = arith.constant 0 : index
      %40 = vector.load %arg7[%c0_22, %c0_23] : memref<8x128xf32, #tpu.memory_space<vmem>>, vector<8x128xf32>
      tpu.vector_store %arg7[%c0_22, %c0_23], %39 {strides = array<i32>} : memref<8x128xf32, #tpu.memory_space<vmem>>, vector<8x128xf32>,
    } else {
    }
    %c0_i32_2 = arith.constant 0 : i32
    %8 = arith.cmpi eq, %arg1, %c0_i32_2 : i32
    %9 = arith.extui %8 : i1 to i32
    %c0_i32_3 = arith.constant 0 : i32
    %10 = arith.cmpi ne, %9, %c0_i32_3 : i32
    scf.if %10 {
      %c0 = arith.constant 0 : index
      %c0_4 = arith.constant 0 : index
      %11 = vector.load %arg5[%c0, %c0_4] : memref<8x128xf32, #tpu.memory_space<vmem>>, vector<8x128xf32>
      %c0_5 = arith.constant 0 : index
      %c0_6 = arith.constant 0 : index
      %c0_7 = arith.constant 0 : index
      %12 = vector.load %arg4[%c0_5, %c0_6, %c0_7] : memref<3x8x128xf32, #tpu.memory_space<vmem>>, vector<1x8x128xf32>
      %13 = vector.shape_cast %12 : vector<1x8x128xf32> to vector<8x128xf32>
      %14 = vector.shape_cast %11 : vector<8x128xf32> to vector<1x8x128xf32>
      tpu.vector_store %arg4[%c0_5, %c0_6, %c0_7], %14 {strides = array<i32>} : memref<3x8x128xf32, #tpu.memory_space<vmem>>, vector<1x8x128xf32>,
      %c0_8 = arith.constant 0 : index
      %c0_9 = arith.constant 0 : index
      %15 = vector.load %arg6[%c0_8, %c0_9] : memref<8x128xf32, #tpu.memory_space<vmem>>, vector<8x128xf32>
      %c1 = arith.constant 1 : index
      %c0_10 = arith.constant 0 : index
      %c0_11 = arith.constant 0 : index
      %16 = vector.load %arg4[%c1, %c0_10, %c0_11] : memref<3x8x128xf32, #tpu.memory_space<vmem>>, vector<1x8x128xf32>
      %17 = vector.shape_cast %16 : vector<1x8x128xf32> to vector<8x128xf32>
      %18 = vector.shape_cast %15 : vector<8x128xf32> to vector<1x8x128xf32>
      tpu.vector_store %arg4[%c1, %c0_10, %c0_11], %18 {strides = array<i32>} : memref<3x8x128xf32, #tpu.memory_space<vmem>>, vector<1x8x128xf32>,
      %c0_12 = arith.constant 0 : index
      %c0_13 = arith.constant 0 : index
      %19 = vector.load %arg7[%c0_12, %c0_13] : memref<8x128xf32, #tpu.memory_space<vmem>>, vector<8x128xf32>
      %c2 = arith.constant 2 : index
      %c0_14 = arith.constant 0 : index
      %c0_15 = arith.constant 0 : index
      %20 = vector.load %arg4[%c2, %c0_14, %c0_15] : memref<3x8x128xf32, #tpu.memory_space<vmem>>, vector<1x8x128xf32>
      %21 = vector.shape_cast %20 : vector<1x8x128xf32> to vector<8x128xf32>
      %22 = vector.shape_cast %19 : vector<8x128xf32> to vector<1x8x128xf32>
      tpu.vector_store %arg4[%c2, %c0_14, %c0_15], %22 {strides = array<i32>} : memref<3x8x128xf32, #tpu.memory_space<vmem>>, vector<1x8x128xf32>,
    } else {
    }
    return
  }
  func.func @transform_0(%arg0: i32, %arg1: i32) -> (i32, i32) {
    %c1_i32 = arith.constant 1 : i32
    %0 = arith.muli %arg0, %c1_i32 : i32
    %1 = arith.addi %0, %arg1 : i32
    %c1_i32_0 = arith.constant 1 : i32
    %2 = arith.minsi %1, %c1_i32_0 : i32
    %c0_i32 = arith.constant 0 : i32
    %c0_i32_1 = arith.constant 0 : i32
    return %2, %c0_i32 : i32, i32
  }
  func.func @transform_1(%arg0: i32, %arg1: i32) -> (i32, i32) {
    %c1_i32 = arith.constant 1 : i32
    %0 = arith.muli %arg0, %c1_i32 : i32
    %1 = arith.addi %0, %arg1 : i32
    %c1_i32_0 = arith.constant 1 : i32
    %2 = arith.minsi %1, %c1_i32_0 : i32
    %c0_i32 = arith.constant 0 : i32
    %c0_i32_1 = arith.constant 0 : i32
    return %2, %c0_i32 : i32, i32
  }
  func.func @transform_2(%arg0: i32, %arg1: i32) -> (i32, i32, i32) {
    %c0_i32 = arith.constant 0 : i32
    %c0_i32_0 = arith.constant 0 : i32
    %c0_i32_1 = arith.constant 0 : i32
    return %arg0, %c0_i32, %c0_i32_0 : i32, i32, i32
  }
}

</mosaic_0001>

<llo_original>
// kernel: tpu_custom_call.1
$region0: #{tpu_custom_call.1}
  #allocation0 [shape = 'u32[]', space=smem, size = 0x4, offset = 0x4, fixed_abs, tag = 'smem constant byte address 0x4 - core index']
  #allocation1 [shape = 'u32[144,128]{1,0:T(1,128)}', space=vmem, size = 0x12000, scoped, tag = 'internal scratch']
  #allocation2 [shape = 'f32[8,128]{1,0:T(8,128)}', space=vmem, size = 0x1000, scoped, tag = 'scratch operand']
  #allocation3 [shape = 'f32[8,128]{1,0:T(8,128)}', space=vmem, size = 0x1000, scoped, tag = 'scratch operand']
  #allocation4 [shape = 'f32[8,128]{1,0:T(8,128)}', space=vmem, size = 0x1000, scoped, tag = 'scratch operand']
  %s0 = inlined_call_operand.hbm [shape: f32[16,128], index: 0, kind: input, shape index: {}]
  %s1 = inlined_call_operand.hbm [shape: f32[16,128], index: 1, kind: input, shape index: {}]
  %s2 = inlined_call_operand.hbm [shape: f32[6,8,128], index: 2, kind: output, shape index: {}]
  %s3 = sld [smem:[#allocation0]]
  $region61: #{tpu_custom_call.1} parent=0
    _
  %s5 = ssub.s32 1, %s3
  %s6 = scalar_select 0, %s5, %s3
  $region1: #{tpu_custom_call.1} parent=0
    #allocation5 [shape = 'u8[8192]{0}', space=vmem, size = 0x2000, scoped, tag = 'input window, operand 0']
    #allocation6 [shape = 's32[2]{0}', space=sflag, size = 0x8, scoped, tag = 'scoped memory for tpu_custom_call.1']
    #allocation7 [shape = 's32[2]{0}', space=sflag, size = 0x8, scoped, tag = 'scoped memory for tpu_custom_call.1']
    #allocation8 [shape = 'u8[8192]{0}', space=vmem, size = 0x2000, scoped, tag = 'input window, operand 1']
    #allocation9 [shape = 's32[2]{0}', space=sflag, size = 0x8, scoped, tag = 'scoped memory for tpu_custom_call.1']
    #allocation10 [shape = 'u8[24576]{0}', space=vmem, size = 0x6000, scoped, tag = 'output window, operand 0']
    %7 = vsyncpa [#allocation6], 0
    %s8 = scalar_lea.sflag [#allocation6], 1
    %9 = vsyncpa %s8, 0
    %10 = vsyncpa [#allocation9], 0
    %s11 = scalar_lea.sflag [#allocation9], 1
    %12 = vsyncpa %s11, 0
    %13 = vsyncpa [#allocation7], 0
    %s14 = scalar_lea.sflag [#allocation7], 1
    %15 = vsyncpa %s14, 0
    loop: start=0, step=1, limit=4
    $region2: #{tpu_custom_call.1} parent=1 // loop_pre_header
      _
    $region3: #{tpu_custom_call.1} parent=1 // loop_header
      %s17 = sphi 0, %s21
      %p18 = scmp.ge.s32.totalorder %s17, 4
      %s24 = sphi 0, %s36
      %s25 = sphi 0, %s32
      %s26 = sphi 0, %s24
      %s27 = sphi 0, %s25
      %s28 = sphi 0, %s26
      %s29 = sphi 0, %s27
      %s45 = sphi 0, %s47
      %s48 = sphi 0, %s45
      %s49 = sphi 0, %s48
      %s65 = sphi 0, %s49
      %s77 = sphi 0, %s79
      %s80 = sphi 0, %s77
      %s81 = sphi 0, %s80
      %s97 = sphi 0, %s81
      %s103 = sphi 0, %s105
      %s106 = sphi 0, %s103
      %s107 = sphi 0, %s106
      %s123 = sphi 0, %s107
    $region4: #{tpu_custom_call.1} parent=1 // loop_header_branch
      %20 = sbr.rel (%p18) target = $region8
    $region5: #{tpu_custom_call.1} parent=1 // loop_body
      %s22 = ssub.s32 %s17, 1
      %s23 = ssub.s32 %s17, 2
      %s30 = sadd.s32 1, %s25
      %p31 = scmp.ge.s32.totalorder %s30, 1
      %s32 = scalar_select %p31, 0, %s30
      %s33 = sadd.s32 1, %s24
      %s34 = scalar_select %p31, %s33, %s24
      %p35 = scmp.ge.s32.totalorder %s34, 2
      %s36 = scalar_select %p35, 0, %s34
      %s37 = sadd.s32 %s24, %s25
      %p38 = scmp.lt.s32.totalorder %s37, 1
      %s39 = scalar_select %p38, %s37, 1
      %s40 = sadd.s32 %s36, %s32
      %p41 = scmp.lt.s32.totalorder %s40, 1
      %s42 = scalar_select %p41, %s40, 1
      %s43 = ssub.s32 %s39, %s42
      %p44 = scmp.eq.s32.totalorder %s43, 0
      %s46 = sadd.s32 %s45, 1
      %s47 = scalar_select %p44, %s45, %s46
      %p50 = pneg %p44
      %p51 = scmp.eq.s32.totalorder %s17, 1
      %p52 = por %p50, %p51
      %p53 = scmp.ne.s32.totalorder %s45, %s48
      %p54 = scmp.eq.s32.totalorder %s17, 0
      %p55 = por %p53, %p54
      %p56 = scmp.ne.s32.totalorder %s45, %s48
      %p57 = scmp.eq.s32.totalorder %s22, 1
      %p58 = por %p56, %p57
      %p59 = scmp.ne.s32.totalorder %s48, %s49
      %p60 = scmp.eq.s32.totalorder %s22, 0
      %p61 = por %p59, %p60
      %p62 = scmp.ne.s32.totalorder %s48, %s49
      %p63 = scmp.eq.s32.totalorder %s23, 1
      %p64 = por %p62, %p63
      %p66 = scmp.ne.s32.totalorder %s49, %s65
      %p67 = scmp.eq.s32.totalorder %s23, 0
      %p68 = por %p66, %p67
      %s69 = sadd.s32 %s24, %s25
      %p70 = scmp.lt.s32.totalorder %s69, 1
      %s71 = scalar_select %p70, %s69, 1
      %s72 = sadd.s32 %s36, %s32
      %p73 = scmp.lt.s32.totalorder %s72, 1
      %s74 = scalar_select %p73, %s72, 1
      %s75 = ssub.s32 %s71, %s74
      %p76 = scmp.eq.s32.totalorder %s75, 0
      %s78 = sadd.s32 %s77, 1
      %s79 = scalar_select %p76, %s77, %s78
      %p82 = pneg %p76
      %p83 = scmp.eq.s32.totalorder %s17, 1
      %p84 = por %p82, %p83
      %p85 = scmp.ne.s32.totalorder %s77, %s80
      %p86 = scmp.eq.s32.totalorder %s17, 0
      %p87 = por %p85, %p86
      %p88 = scmp.ne.s32.totalorder %s77, %s80
      %p89 = scmp.eq.s32.totalorder %s22, 1
      %p90 = por %p88, %p89
      %p91 = scmp.ne.s32.totalorder %s80, %s81
      %p92 = scmp.eq.s32.totalorder %s22, 0
      %p93 = por %p91, %p92
      %p94 = scmp.ne.s32.totalorder %s80, %s81
      %p95 = scmp.eq.s32.totalorder %s23, 1
      %p96 = por %p94, %p95
      %p98 = scmp.ne.s32.totalorder %s81, %s97
      %p99 = scmp.eq.s32.totalorder %s23, 0
      %p100 = por %p98, %p99
      %s101 = ssub.s32 %s24, %s36
      %p102 = scmp.eq.s32.totalorder %s101, 0
      %s104 = sadd.s32 %s103, 1
      %s105 = scalar_select %p102, %s103, %s104
      %p108 = pneg %p102
      %p109 = scmp.eq.s32.totalorder %s17, 1
      %p110 = por %p108, %p109
      %p111 = scmp.ne.s32.totalorder %s103, %s106
      %p112 = scmp.eq.s32.totalorder %s17, 0
      %p113 = por %p111, %p112
      %p114 = scmp.ne.s32.totalorder %s103, %s106
      %p115 = scmp.eq.s32.totalorder %s22, 1
      %p116 = por %p114, %p115
      %p117 = scmp.ne.s32.totalorder %s106, %s107
      %p118 = scmp.eq.s32.totalorder %s22, 0
      %p119 = por %p117, %p118
      %p120 = scmp.ne.s32.totalorder %s106, %s107
      %p121 = scmp.eq.s32.totalorder %s23, 1
      %p122 = por %p120, %p121
      %p124 = scmp.ne.s32.totalorder %s107, %s123
      %p125 = scmp.eq.s32.totalorder %s23, 0
      %p126 = por %p124, %p125
      %p127 = scmp.le.s32.totalorder 1, %s17
      %p128 = scmp.lt.s32.totalorder %s17, 3
      %p129 = pnand %p127, %p128
      %p130 = pneg %p129
      // Predicated region
      $region9: #{tpu_custom_call.1} parent=5 // pred_check
        _
      $region10: #{tpu_custom_call.1} parent=5 // pred_check_branch
        %132 = sbr.rel (%p129) target = $region12
      $region11: #{tpu_custom_call.1} parent=5 // pred_region
        %s133 = ssub.s32 %s17, 1
      $region12: #{tpu_custom_call.1} parent=5 // pred_fallthru
        _
      %p134 = scmp.lt.s32.totalorder %s17, 2
      // Predicated region
      $region13: #{tpu_custom_call.1} parent=5 // pred_check
        %p135 = pneg %p134
      $region14: #{tpu_custom_call.1} parent=5 // pred_check_branch
        %137 = sbr.rel (%p135) target = $region16
      $region15: #{tpu_custom_call.1} parent=5 // pred_region
        // Predicated region
        $region17: #{tpu_custom_call.1} parent=15 // pred_check
          %p138 = pneg %p55
        $region18: #{tpu_custom_call.1} parent=15 // pred_check_branch
          %140 = sbr.rel (%p138) target = $region20
        $region19: #{tpu_custom_call.1} parent=15 // pred_region
          %s141 = sand.u32 %s45, 1
          %s142 = scalar_lea.sflag [#allocation6], %s141
          %s143 = sand.u32 %s45, 1
          %s144 = smul.addr %s143, 8
          %s145 = scalar_lea.vmem [#allocation5], %s144
          %s146 = sadd.s32 %s24, %s25
          %p147 = scmp.lt.s32.totalorder %s146, 1
          %s148 = scalar_select %p147, %s146, 1
          %s150 = ssub.s32 128, 128
          %151 = vsyncadd %s142, %s150
          %s152 = smul.addr %s148, 128
          %s153 = scalar_lea.hbm %s0, %s152
          %s155 = sshll.u32 %s145, 4
          %s156 = int_to_ptr.vmem [resolvable:$true] %s155
          %158 = dma.hbm_to_vmem [thread:$0]  %s153, 128, %s156, %s142
        $region20: #{tpu_custom_call.1} parent=15 // pred_fallthru
          _
        // Predicated region
        $region21: #{tpu_custom_call.1} parent=15 // pred_check
          %p159 = pneg %p87
        $region22: #{tpu_custom_call.1} parent=15 // pred_check_branch
          %161 = sbr.rel (%p159) target = $region24
        $region23: #{tpu_custom_call.1} parent=15 // pred_region
          %s162 = sand.u32 %s77, 1
          %s163 = scalar_lea.sflag [#allocation9], %s162
          %s164 = sand.u32 %s77, 1
          %s165 = smul.addr %s164, 8
          %s166 = scalar_lea.vmem [#allocation8], %s165
          %s167 = sadd.s32 %s24, %s25
          %p168 = scmp.lt.s32.totalorder %s167, 1
          %s169 = scalar_select %p168, %s167, 1
          %s171 = ssub.s32 128, 128
          %172 = vsyncadd %s163, %s171
          %s173 = smul.addr %s169, 128
          %s174 = scalar_lea.hbm %s1, %s173
          %s176 = sshll.u32 %s166, 4
          %s177 = int_to_ptr.vmem [resolvable:$true] %s176
          %179 = dma.hbm_to_vmem [thread:$0]  %s174, 128, %s177, %s163
        $region24: #{tpu_custom_call.1} parent=15 // pred_fallthru
          _
      $region16: #{tpu_custom_call.1} parent=5 // pred_fallthru
        _
      %p180 = scmp.le.s32.totalorder 1, %s17
      %p181 = scmp.lt.s32.totalorder %s17, 3
      %p182 = pnand %p180, %p181
      %p183 = pneg %p182
      // Predicated region
      $region25: #{tpu_custom_call.1} parent=5 // pred_check
        _
      $region26: #{tpu_custom_call.1} parent=5 // pred_check_branch
        %185 = sbr.rel (%p182) target = $region28
      $region27: #{tpu_custom_call.1} parent=5 // pred_region
        %s186 = ssub.s32 %s17, 1
        %s187 = sand.u32 %s48, 1
        %s188 = scalar_lea.sflag [#allocation6], %s187
        %s189 = sand.u32 %s48, 1
        %s190 = smul.addr %s189, 8
        %s191 = scalar_lea.vmem [#allocation5], %s190
        // Predicated region
        $region29: #{tpu_custom_call.1} parent=27 // pred_check
          %p192 = pneg %p61
        $region30: #{tpu_custom_call.1} parent=27 // pred_check_branch
          %194 = sbr.rel (%p192) target = $region32
        $region31: #{tpu_custom_call.1} parent=27 // pred_region
          %195 = dma.done %s188, 128
        $region32: #{tpu_custom_call.1} parent=27 // pred_fallthru
          _
        %s196 = sand.u32 %s80, 1
        %s197 = scalar_lea.sflag [#allocation9], %s196
        %s198 = sand.u32 %s80, 1
        %s199 = smul.addr %s198, 8
        %s200 = scalar_lea.vmem [#allocation8], %s199
        // Predicated region
        $region33: #{tpu_custom_call.1} parent=27 // pred_check
          %p201 = pneg %p93
        $region34: #{tpu_custom_call.1} parent=27 // pred_check_branch
          %203 = sbr.rel (%p201) target = $region36
        $region35: #{tpu_custom_call.1} parent=27 // pred_region
          %204 = dma.done %s197, 128
        $region36: #{tpu_custom_call.1} parent=27 // pred_fallthru
          _
        %s205 = sand.u32 %s48, 1
        %s206 = scalar_lea.sflag [#allocation6], %s205
        %s207 = sand.u32 %s48, 1
        %s208 = smul.addr %s207, 8
        %s209 = scalar_lea.vmem [#allocation5], %s208
        %p210 = pneg %p61
        %p211 = pneg %p58
        %s212 = sand.u32 %s80, 1
        %s213 = scalar_lea.sflag [#allocation9], %s212
        %s214 = sand.u32 %s80, 1
        %s215 = smul.addr %s214, 8
        %s216 = scalar_lea.vmem [#allocation8], %s215
        %p217 = pneg %p93
        %p218 = pneg %p90
        %p219 = pneg %p119
        %p220 = pneg %p116
        %s221 = sand.u32 %s106, 1
        %s222 = scalar_lea.sflag [#allocation7], %s221
        %s223 = sand.u32 %s106, 1
        %s224 = smul.addr %s223, 24
        %s225 = scalar_lea.vmem [#allocation10], %s224
        %s226 = sadd.s32 %s26, %s27
        %p227 = scmp.lt.s32.totalorder %s226, 1
        %s228 = scalar_select %p227, %s226, 1
        %s229 = sadd.s32 %s26, %s27
        %p230 = scmp.lt.s32.totalorder %s229, 1
        %s231 = scalar_select %p230, %s229, 1
        %s232 = smul.u32 3, %s26
        %s233 = sadd.s32 %s26, %s27
        %p234 = scmp.eq.s32.totalorder %s27, 0
        // Predicated region
        $region37: #{tpu_custom_call.1} parent=27 // pred_check
          %p235 = pneg %p234
        $region38: #{tpu_custom_call.1} parent=27 // pred_check_branch
          %237 = sbr.rel (%p235) target = $region40
        $region39: #{tpu_custom_call.1} parent=27 // pred_region
          %238 = vst [vmem:[#allocation2] sm:$0xff] 0.0
          %239 = vst [vmem:[#allocation3] sm:$0xff] 0.0
          %240 = vst [vmem:[#allocation4] sm:$0xff] 0.0
        $region40: #{tpu_custom_call.1} parent=27 // pred_fallthru
          _
        %p241 = scmp.lt.s32.totalorder %s233, 2
        // Predicated region
        $region41: #{tpu_custom_call.1} parent=27 // pred_check
          %p242 = pneg %p241
        $region42: #{tpu_custom_call.1} parent=27 // pred_check_branch
          %244 = sbr.rel (%p242) target = $region44
        $region43: #{tpu_custom_call.1} parent=27 // pred_region
          %v245 = vld [vmem:[%s191] sm:$0xff]
          %v246 = vld [vmem:[%s200] sm:$0xff]
          %v247 = vld [vmem:[#allocation2] sm:$0xff]
          %v248 = vmul.f32 %v245, %v246
          %v249 = vadd.f32 %v248, 0.0
          %v250 = vadd.f32 %v247, %v249
          %251 = vst [vmem:[#allocation2] sm:$0xff] %v250
          %v252 = vld [vmem:[#allocation3] sm:$0xff]
          %v253 = vadd.f32 %v245, %v246
          %v254 = vadd.f32 %v253, 0.0
          %v255 = vadd.f32 %v252, %v254
          %256 = vst [vmem:[#allocation3] sm:$0xff] %v255
          %v257 = vlog2.pop %v245
          %v258 = vmul.f32 %v257, 0.6931472
          %v259 = vmax.f32 %v258, -100.0
          %v260 = vsub.f32 1.0, %v245
          %v261 = vlog2.pop %v260
          %v262 = vmul.f32 %v261, 0.6931472
          %v263 = vmax.f32 %v262, -100.0
          %v264 = vsub.f32 %v259, %v263
          %v265 = vmul.f32 %v246, %v264
          %v266 = vadd.f32 %v265, %v263
          %v267 = vld [vmem:[#allocation4] sm:$0xff]
          %v268 = vadd.f32 %v266, 0.0
          %v269 = vadd.f32 %v267, %v268
          %270 = vst [vmem:[#allocation4] sm:$0xff] %v269
        $region44: #{tpu_custom_call.1} parent=27 // pred_fallthru
          _
        // Predicated region
        $region45: #{tpu_custom_call.1} parent=27 // pred_check
          %p271 = pneg %p234
        $region46: #{tpu_custom_call.1} parent=27 // pred_check_branch
          %273 = sbr.rel (%p271) target = $region48
        $region47: #{tpu_custom_call.1} parent=27 // pred_region
          %v274 = vld [vmem:[#allocation2] sm:$0xff]
          %275 = vst [vmem:[%s225] sm:$0xff] %v274
          %v276 = vld [vmem:[#allocation3] sm:$0xff]
          %s277 = scalar_lea.vmem %s225, 8 [#allocation10]
          %278 = vst [vmem:[%s277] sm:$0xff] %v276
          %v279 = vld [vmem:[#allocation4] sm:$0xff]
          %s280 = scalar_lea.vmem %s225, 16 [#allocation10]
          %281 = vst [vmem:[%s280] sm:$0xff] %v279
        $region48: #{tpu_custom_call.1} parent=27 // pred_fallthru
          _
        %s282 = sand.u32 %s106, 1
        %s283 = scalar_lea.sflag [#allocation7], %s282
        %s284 = sand.u32 %s106, 1
        %s285 = smul.addr %s284, 24
        %s286 = scalar_lea.vmem [#allocation10], %s285
        // Predicated region
        $region49: #{tpu_custom_call.1} parent=27 // pred_check
          %p287 = pneg %p116
        $region50: #{tpu_custom_call.1} parent=27 // pred_check_branch
          %289 = sbr.rel (%p287) target = $region52
        $region51: #{tpu_custom_call.1} parent=27 // pred_region
          %s290 = smul.u32 3, %s26
          %s292 = ssub.s32 384, 384
          %293 = vsyncadd %s283, %s292
          %s294 = smul.addr %s290, 128
          %s295 = scalar_lea.hbm %s2, %s294
          %s296 = sshll.u32 %s286, 4
          %s297 = int_to_ptr.vmem [resolvable:$true] %s296
          %302 = dma.vmem_to_hbm [thread:$0]  %s297, 384, %s295, %s283, 128, 128, 8
        $region52: #{tpu_custom_call.1} parent=27 // pred_fallthru
          _
      $region28: #{tpu_custom_call.1} parent=5 // pred_fallthru
        _
      %p303 = scmp.le.s32.totalorder 2, %s17
      // Predicated region
      $region53: #{tpu_custom_call.1} parent=5 // pred_check
        %p304 = pneg %p303
      $region54: #{tpu_custom_call.1} parent=5 // pred_check_branch
        %306 = sbr.rel (%p304) target = $region56
      $region55: #{tpu_custom_call.1} parent=5 // pred_region
        %s307 = ssub.s32 %s17, 2
        // Predicated region
        $region57: #{tpu_custom_call.1} parent=55 // pred_check
          %p308 = pneg %p122
        $region58: #{tpu_custom_call.1} parent=55 // pred_check_branch
          %310 = sbr.rel (%p308) target = $region60
        $region59: #{tpu_custom_call.1} parent=55 // pred_region
          %s311 = sand.u32 %s107, 1
          %s312 = scalar_lea.sflag [#allocation7], %s311
          %s313 = sand.u32 %s107, 1
          %s314 = smul.addr %s313, 24
          %s315 = scalar_lea.vmem [#allocation10], %s314
          %316 = dma.done %s312, 384
        $region60: #{tpu_custom_call.1} parent=55 // pred_fallthru
          _
      $region56: #{tpu_custom_call.1} parent=5 // pred_fallthru
        _
    $region6: #{tpu_custom_call.1} parent=1 // loop_footer
      %s21 = sadd.s32 1, %s17
    $region7: #{tpu_custom_call.1} parent=1 // loop_footer_branch
      %16 = sbr.rel target = $region3
    $region8: #{tpu_custom_call.1} parent=1 // loop_exit
      _
    %317 = vsyncpa [#allocation6], 1
    %s318 = scalar_lea.sflag [#allocation6], 1
    %319 = vsyncpa %s318, 1
    %320 = vsyncpa [#allocation9], 1
    %s321 = scalar_lea.sflag [#allocation9], 1
    %322 = vsyncpa %s321, 1
    %323 = vsyncpa [#allocation7], 1
    %s324 = scalar_lea.sflag [#allocation7], 1
    %325 = vsyncpa %s324, 1

</llo_original>
